<compile_context>
chip_gen: v6e
topology: v6e:2x2x1
jax: 0.10.0
libtpu: 0.0.40
codegen_flags: <defaults>
</compile_context>

<pallas_src>
import math
import functools

import jax
import jax.numpy as jnp
from jax import lax
from jax.experimental import pallas as pl
from jax.experimental.pallas import tpu as pltpu


def _arcface_kernel(labels_ref, emb_ref, w_ref, inv_norm_ref, out_ref, *,
                    tc, cos_m, sin_m, th, mm, scale):
    # grid = (batch_tiles, class_tiles); class-tile index is axis 1.
    j = pl.program_id(1)

    # Embeddings arrive already L2-normalized (f32 normalize in the wrapper,
    # then cast to bf16 for the MXU).
    emb_n = emb_ref[...]                                   # (TB, D) bf16

    # cosine = emb_n @ w_raw^T on the MXU (contract both last/lane dims, no
    # transpose), f32 accumulate, then fold the per-class inverse norm into
    # the (TB, TC) result instead of normalizing the (TC, D) operand.
    cosine = lax.dot_general(
        emb_n, w_ref[...],
        dimension_numbers=(((1,), (1,)), ((), ())),
        preferred_element_type=jnp.float32)                # (TB, TC) f32
    cosine = cosine * inv_norm_ref[...]                    # (1, TC) broadcast

    # Additive angular margin.  Clamp the sqrt argument: rounding can push
    # |cosine| slightly above 1 and would otherwise produce NaN.
    sine = jnp.sqrt(jnp.maximum(1.0 - cosine * cosine, 0.0))
    phi = cosine * cos_m - sine * sin_m
    phi = jnp.where(cosine > th, phi, cosine - mm)

    # One-hot select at the label column.  Shift the (TB, 1) labels by the
    # scalar j*tc instead of adding j*tc to the full (TB, TC) iota.
    rel_labels = labels_ref[...] - j * tc                  # (TB, 1) int32
    col = lax.broadcasted_iota(jnp.int32, cosine.shape, 1)
    out_ref[...] = (jnp.where(col == rel_labels, phi, cosine)
                    * scale).astype(out_ref.dtype)


def arcface_forward(embeddings, labels, weight, *, margin=0.5, scale=64.0,
                    tile_classes=1024, tile_batch=None):
    """embeddings: (B, D), labels: (B,) int, weight: (C, D).
    Returns scaled ArcFace logits of shape (B, C), f32."""
    B, D = embeddings.shape
    C, D_w = weight.shape
    assert D == D_w

    # Largest batch tile possible (whole batch resident by default): streamed
    # weight HBM traffic = C*D*bytes * (B/tb), so tb=B reads the weight once.
    tb = B if tile_batch is None else min(tile_batch, B)
    tc = min(tile_classes, C)

    def est_vmem(tb_, tc_):
        return (2 * tc_ * D * 2          # bf16 weight tile, double-buffered
                + 2 * tb_ * tc_ * 4      # f32 output tile, double-buffered
                + 2 * tb_ * D * 2        # bf16 embedding tile
                + 2 * tc_ * 4            # inv-norm row
                + 2 * tb_ * 128 * 4      # labels tile (lane-padded)
                + (1 << 20))             # slack

    # Keep under ~44 MiB so the same tiling fits v7x's 64 MiB physical VMEM;
    # shrink the class tile first (batch tile is the bandwidth lever).
    VMEM_CAP = 44 * 1024 * 1024
    while est_vmem(tb, tc) > VMEM_CAP and tc > 128 and C % (tc // 2) == 0:
        tc //= 2
    while est_vmem(tb, tc) > VMEM_CAP and tb > 8 and B % (tb // 2) == 0:
        tb //= 2

    assert C % tc == 0, "num_classes must be divisible by the class tile"
    assert B % tb == 0, "batch must be divisible by the batch tile"

    cos_m = math.cos(margin)
    sin_m = math.sin(margin)
    th = math.cos(math.pi - margin)
    mm = math.sin(math.pi - margin) * margin

    # Hoisted: L2-normalize embeddings ONCE in f32, then cast to bf16 for the
    # MXU.  eps^2 = 1e-24 matches F.normalize's max(norm, 1e-12) floor.
    emb = embeddings.astype(jnp.float32)
    emb_n = emb * lax.rsqrt(
        jnp.maximum(jnp.sum(emb * emb, axis=1, keepdims=True), 1e-24))
    emb_n = emb_n.astype(jnp.bfloat16)

    # Per-class inverse norm computed in f32 (preserves zero-vector eps
    # semantics), streamed as a (1, C) row; weight streamed as bf16.
    w_f32 = weight.astype(jnp.float32)
    inv_norm = lax.rsqrt(
        jnp.maximum(jnp.sum(w_f32 * w_f32, axis=1), 1e-24)).reshape(1, C)
    w_bf16 = weight.astype(jnp.bfloat16)

    labels_2d = labels.astype(jnp.int32).reshape(B, 1)

    kernel = functools.partial(
        _arcface_kernel, tc=tc,
        cos_m=cos_m, sin_m=sin_m, th=th, mm=mm, scale=float(scale))

    vmem_limit = int(min(max(est_vmem(tb, tc), 16 * 1024 * 1024),
                         48 * 1024 * 1024))

    grid = (B // tb, C // tc)

    return pl.pallas_call(
        kernel,
        out_shape=jax.ShapeDtypeStruct((B, C), jnp.float32),
        grid=grid,
        in_specs=[
            pl.BlockSpec((tb, 1), lambda i, j: (i, 0)),    # labels tile
            pl.BlockSpec((tb, D), lambda i, j: (i, 0)),    # normalized bf16
                                                           # embeddings (resident
                                                           # across j)
            pl.BlockSpec((tc, D), lambda i, j: (j, 0)),    # streamed bf16 weight
            pl.BlockSpec((1, tc), lambda i, j: (0, j)),    # per-class inv-norm
        ],
        out_specs=pl.BlockSpec((tb, tc), lambda i, j: (i, j)),
        compiler_params=pltpu.CompilerParams(
            dimension_semantics=("parallel", "parallel"),
            vmem_limit_bytes=vmem_limit),
    )(labels_2d, emb_n, w_bf16, inv_norm)


def _arcface_ref(embeddings, labels, weight, margin=0.5, scale=64.0):
    # Pure-JAX f32 reference mirroring the PyTorch module.
    cos_m, sin_m = math.cos(margin), math.sin(margin)
    th = math.cos(math.pi - margin)
    mm = math.sin(math.pi - margin) * margin
    e = embeddings / jnp.maximum(
        jnp.linalg.norm(embeddings, axis=1, keepdims=True), 1e-12)
    w = weight / jnp.maximum(
        jnp.linalg.norm(weight, axis=1, keepdims=True), 1e-12)
    cosine = e @ w.T
    sine = jnp.sqrt(jnp.maximum(1.0 - cosine ** 2, 0.0))
    phi = cosine * cos_m - sine * sin_m
    phi = jnp.where(cosine > th, phi, cosine - mm)
    one_hot = jax.nn.one_hot(labels, weight.shape[0], dtype=cosine.dtype)
    return (one_hot * phi + (1.0 - one_hot) * cosine) * scale


if __name__ == "__main__":
    # Small, TPU-friendly shapes consistent with the module; tile choices give
    # a (2, 2) grid so both grid axes are exercised.
    B = 32             # batch
    D = 256            # embedding_dim
    C = 1024           # num_classes
    margin, scale = 0.5, 64.0

    key = jax.random.PRNGKey(0)
    k_emb, k_w, k_lab = jax.random.split(key, 3)

    embeddings = jax.random.normal(k_emb, (B, D), dtype=jnp.float32)
    labels = jax.random.randint(k_lab, (B,), 0, C, dtype=jnp.int32)

    # Deterministic xavier_uniform_-style init for weight (C, D):
    bound = math.sqrt(6.0 / (C + D))
    weight = jax.random.uniform(k_w, (C, D), dtype=jnp.float32,
                                minval=-bound, maxval=bound)

    out = arcface_forward(embeddings, labels, weight,
                          margin=margin, scale=scale,
                          tile_classes=512, tile_batch=16)
    out = jax.block_until_ready(out)

    ref = _arcface_ref(embeddings, labels, weight, margin=margin, scale=scale)
    assert out.shape == (B, C)
    # bf16 MXU operands + scale=64 amplify absolute error; tolerance chosen
    # accordingly (typical max-abs error is ~1e-2 at these shapes).
    max_err = float(jnp.max(jnp.abs(out - ref)))
    assert max_err < 0.25, f"mismatch vs reference: max abs err {max_err}"

    print("KERNEL_OK")
</pallas_src>

<mosaic_0001>
module attributes {stable_mosaic.version = 11 : i64} {
  func.func @_arcface_kernel(%arg0: i32, %arg1: i32, %arg2: memref<16x1xi32, #tpu.memory_space<vmem>>, %arg3: memref<16x256xbf16, #tpu.memory_space<vmem>>, %arg4: memref<512x256xbf16, #tpu.memory_space<vmem>>, %arg5: memref<1x512xf32, #tpu.memory_space<vmem>>, %arg6: memref<16x512xf32, #tpu.memory_space<vmem>>) attributes {dimension_semantics = [#tpu.dimension_semantics<parallel>, #tpu.dimension_semantics<parallel>], iteration_bounds = array<i64: 2, 2>, scalar_prefetch = 0 : i64, scratch_operands = 0 : i64, tpu.core_type = #tpu.core_type<tc>, window_params = [{transform_indices = @transform_0, window_bounds = array<i64: 16, 1>}, {transform_indices = @transform_1, window_bounds = array<i64: 16, 256>}, {transform_indices = @transform_2, window_bounds = array<i64: 512, 256>}, {transform_indices = @transform_3, window_bounds = array<i64: 1, 512>}, {transform_indices = @transform_4, window_bounds = array<i64: 16, 512>}]} {
    %c0 = arith.constant 0 : index
    %c0_0 = arith.constant 0 : index
    %0 = vector.load %arg3[%c0, %c0_0] : memref<16x256xbf16, #tpu.memory_space<vmem>>, vector<16x256xbf16>
    %c0_1 = arith.constant 0 : index
    %c0_2 = arith.constant 0 : index
    %1 = vector.load %arg4[%c0_1, %c0_2] : memref<512x256xbf16, #tpu.memory_space<vmem>>, vector<512x256xbf16>
    %cst = arith.constant dense<0.000000e+00> : vector<16x512xf32>
    %2 = tpu.matmul %0, %1, %cst {dimension_numbers = #tpu.dot_dimension_numbers<[1], [1], [0], [0], [0, 0, 1, 0], [], []>} : vector<16x256xbf16>, vector<512x256xbf16>, vector<16x512xf32> -> vector<16x512xf32>
    %c0_3 = arith.constant 0 : index
    %c0_4 = arith.constant 0 : index
    %3 = vector.load %arg5[%c0_3, %c0_4] : memref<1x512xf32, #tpu.memory_space<vmem>>, vector<1x512xf32>
    %4 = vector.broadcast %3 : vector<1x512xf32> to vector<16x512xf32>
    %5 = arith.mulf %2, %4 : vector<16x512xf32>
    %6 = arith.mulf %5, %5 : vector<16x512xf32>
    %cst_5 = arith.constant 1.000000e+00 : f32
    %7 = vector.broadcast %cst_5 : f32 to vector<16x512xf32>
    %8 = arith.subf %7, %6 : vector<16x512xf32>
    %cst_6 = arith.constant 0.000000e+00 : f32
    %9 = vector.broadcast %cst_6 : f32 to vector<16x512xf32>
    %10 = arith.maximumf %8, %9 : vector<16x512xf32>
    %11 = math.sqrt %10 : vector<16x512xf32>
    %cst_7 = arith.constant 0.87758255 : f32
    %12 = vector.broadcast %cst_7 : f32 to vector<16x512xf32>
    %13 = arith.mulf %5, %12 : vector<16x512xf32>
    %cst_8 = arith.constant 0.47942555 : f32
    %14 = vector.broadcast %cst_8 : f32 to vector<16x512xf32>
    %15 = arith.mulf %11, %14 : vector<16x512xf32>
    %16 = arith.subf %13, %15 : vector<16x512xf32>
    %cst_9 = arith.constant -0.87758255 : f32
    %17 = vector.broadcast %cst_9 : f32 to vector<16x512xf32>
    %18 = arith.cmpf ogt, %5, %17 : vector<16x512xf32>
    %cst_10 = arith.constant 0.239712775 : f32
    %19 = vector.broadcast %cst_10 : f32 to vector<16x512xf32>
    %20 = arith.subf %5, %19 : vector<16x512xf32>
    %21 = arith.select %18, %16, %20 : vector<16x512xi1>, vector<16x512xf32>
    %c0_11 = arith.constant 0 : index
    %c0_12 = arith.constant 0 : index
    %22 = vector.load %arg2[%c0_11, %c0_12] : memref<16x1xi32, #tpu.memory_space<vmem>>, vector<16x1xi32>
    %c512_i32 = arith.constant 512 : i32
    %23 = arith.muli %arg1, %c512_i32 : i32
    %24 = vector.broadcast %23 : i32 to vector<16x1xi32>
    %25 = arith.subi %22, %24 : vector<16x1xi32>
    %26 = tpu.iota {dimensions = array<i32: 1>} : vector<16x512xi32>
    %27 = vector.broadcast %25 : vector<16x1xi32> to vector<16x512xi32>
    %28 = arith.cmpi eq, %26, %27 : vector<16x512xi32>
    %29 = arith.select %28, %21, %5 : vector<16x512xi1>, vector<16x512xf32>
    %cst_13 = arith.constant 6.400000e+01 : f32
    %30 = vector.broadcast %cst_13 : f32 to vector<16x512xf32>
    %31 = arith.mulf %29, %30 : vector<16x512xf32>
    %c0_14 = arith.constant 0 : index
    %c0_15 = arith.constant 0 : index
    %32 = vector.load %arg6[%c0_14, %c0_15] : memref<16x512xf32, #tpu.memory_space<vmem>>, vector<16x512xf32>
    tpu.vector_store %arg6[%c0_14, %c0_15], %31 {strides = array<i32>} : memref<16x512xf32, #tpu.memory_space<vmem>>, vector<16x512xf32>,
    return
  }
  func.func @transform_0(%arg0: i32, %arg1: i32) -> (i32, i32) {
    %c0_i32 = arith.constant 0 : i32
    %c0_i32_0 = arith.constant 0 : i32
    return %arg0, %c0_i32 : i32, i32
  }
  func.func @transform_1(%arg0: i32, %arg1: i32) -> (i32, i32) {
    %c0_i32 = arith.constant 0 : i32
    %c0_i32_0 = arith.constant 0 : i32
    return %arg0, %c0_i32 : i32, i32
  }
  func.func @transform_2(%arg0: i32, %arg1: i32) -> (i32, i32) {
    %c0_i32 = arith.constant 0 : i32
    %c0_i32_0 = arith.constant 0 : i32
    return %arg1, %c0_i32 : i32, i32
  }
  func.func @transform_3(%arg0: i32, %arg1: i32) -> (i32, i32) {
    %c0_i32 = arith.constant 0 : i32
    %c0_i32_0 = arith.constant 0 : i32
    return %c0_i32, %arg1 : i32, i32
  }
  func.func @transform_4(%arg0: i32, %arg1: i32) -> (i32, i32) {
    %c0_i32 = arith.constant 0 : i32
    return %arg0, %arg1 : i32, i32
  }
}

</mosaic_0001>

<llo_original>
// kernel: tpu_custom_call.1
$region0: #{tpu_custom_call.1}
  #allocation0 [shape = 'u32[]', space=smem, size = 0x4, offset = 0x4, fixed_abs, tag = 'smem constant byte address 0x4 - core index']
  #allocation1 [shape = 'u32[144,128]{1,0:T(1,128)}', space=vmem, size = 0x12000, scoped, tag = 'internal scratch']
  %s0 = inlined_call_operand.vmem [shape: s32[32,1], index: 0, kind: input, shape index: {}]
  %s1 = inlined_call_operand.vmem [shape: bf16[32,256], index: 1, kind: input, shape index: {}]
  %s2 = inlined_call_operand.hbm [shape: bf16[1024,256], index: 2, kind: input, shape index: {}]
  %s3 = inlined_call_operand.hbm [shape: f32[1,1024], index: 3, kind: input, shape index: {}]
  %s4 = inlined_call_operand.hbm [shape: f32[32,1024], index: 4, kind: output, shape index: {}]
  %s5 = sld [smem:[#allocation0]]
  $region57: #{tpu_custom_call.1} parent=0
    _
  %s7 = ssub.s32 1, %s5
  %s8 = scalar_select 0, %s7, %s5
  $region1: #{tpu_custom_call.1} parent=0
    #allocation2 [shape = 'u8[524288]{0}', space=vmem, size = 0x80000, scoped, tag = 'input window, operand 2']
    #allocation3 [shape = 's32[2]{0}', space=sflag, size = 0x8, scoped, tag = 'scoped memory for tpu_custom_call.1']
    #allocation4 [shape = 's32[2]{0}', space=sflag, size = 0x8, scoped, tag = 'scoped memory for tpu_custom_call.1']
    #allocation5 [shape = 'u8[4096]{0}', space=vmem, size = 0x1000, scoped, tag = 'input window, operand 3']
    #allocation6 [shape = 's32[2]{0}', space=sflag, size = 0x8, scoped, tag = 'scoped memory for tpu_custom_call.1']
    #allocation7 [shape = 'u8[65536]{0}', space=vmem, size = 0x10000, scoped, tag = 'output window, operand 0']
    %9 = vsyncpa [#allocation3], 0
    %s10 = scalar_lea.sflag [#allocation3], 1
    %11 = vsyncpa %s10, 0
    %12 = vsyncpa [#allocation6], 0
    %s13 = scalar_lea.sflag [#allocation6], 1
    %14 = vsyncpa %s13, 0
    %15 = vsyncpa [#allocation4], 0
    %s16 = scalar_lea.sflag [#allocation4], 1
    %17 = vsyncpa %s16, 0
    loop: start=0, step=1, limit=6
    $region2: #{tpu_custom_call.1} parent=1 // loop_pre_header
      _
    $region3: #{tpu_custom_call.1} parent=1 // loop_header
      %s19 = sphi 0, %s23
      %p20 = scmp.ge.s32.totalorder %s19, 6
      %s26 = sphi 0, %s38
      %s27 = sphi 0, %s34
      %s28 = sphi 0, %s26
      %s29 = sphi 0, %s27
      %s30 = sphi 0, %s28
      %s31 = sphi 0, %s29
      %s41 = sphi 0, %s43
      %s44 = sphi 0, %s41
      %s45 = sphi 0, %s44
      %s61 = sphi 0, %s45
      %s67 = sphi 0, %s69
      %s70 = sphi 0, %s67
      %s71 = sphi 0, %s70
      %s87 = sphi 0, %s71
      %s93 = sphi 0, %s95
      %s96 = sphi 0, %s93
      %s97 = sphi 0, %s96
      %s113 = sphi 0, %s97
      %s119 = sphi 0, %s121
      %s122 = sphi 0, %s119
      %s123 = sphi 0, %s122
      %s139 = sphi 0, %s123
      %s147 = sphi 0, %s149
      %s150 = sphi 0, %s147
      %s151 = sphi 0, %s150
      %s167 = sphi 0, %s151
    $region4: #{tpu_custom_call.1} parent=1 // loop_header_branch
      %22 = sbr.rel (%p20) target = $region8
    $region5: #{tpu_custom_call.1} parent=1 // loop_body
      %s24 = ssub.s32 %s19, 1
      %s25 = ssub.s32 %s19, 2
      %s32 = sadd.s32 1, %s27
      %p33 = scmp.ge.s32.totalorder %s32, 2
      %s34 = scalar_select %p33, 0, %s32
      %s35 = sadd.s32 1, %s26
      %s36 = scalar_select %p33, %s35, %s26
      %p37 = scmp.ge.s32.totalorder %s36, 2
      %s38 = scalar_select %p37, 0, %s36
      %s39 = ssub.s32 %s26, %s38
      %p40 = scmp.eq.s32.totalorder %s39, 0
      %s42 = sadd.s32 %s41, 1
      %s43 = scalar_select %p40, %s41, %s42
      %p46 = pneg %p40
      %p47 = scmp.eq.s32.totalorder %s19, 3
      %p48 = por %p46, %p47
      %p49 = scmp.ne.s32.totalorder %s41, %s44
      %p50 = scmp.eq.s32.totalorder %s19, 0
      %p51 = por %p49, %p50
      %p52 = scmp.ne.s32.totalorder %s41, %s44
      %p53 = scmp.eq.s32.totalorder %s24, 3
      %p54 = por %p52, %p53
      %p55 = scmp.ne.s32.totalorder %s44, %s45
      %p56 = scmp.eq.s32.totalorder %s24, 0
      %p57 = por %p55, %p56
      %p58 = scmp.ne.s32.totalorder %s44, %s45
      %p59 = scmp.eq.s32.totalorder %s25, 3
      %p60 = por %p58, %p59
      %p62 = scmp.ne.s32.totalorder %s45, %s61
      %p63 = scmp.eq.s32.totalorder %s25, 0
      %p64 = por %p62, %p63
      %s65 = ssub.s32 %s26, %s38
      %p66 = scmp.eq.s32.totalorder %s65, 0
      %s68 = sadd.s32 %s67, 1
      %s69 = scalar_select %p66, %s67, %s68
      %p72 = pneg %p66
      %p73 = scmp.eq.s32.totalorder %s19, 3
      %p74 = por %p72, %p73
      %p75 = scmp.ne.s32.totalorder %s67, %s70
      %p76 = scmp.eq.s32.totalorder %s19, 0
      %p77 = por %p75, %p76
      %p78 = scmp.ne.s32.totalorder %s67, %s70
      %p79 = scmp.eq.s32.totalorder %s24, 3
      %p80 = por %p78, %p79
      %p81 = scmp.ne.s32.totalorder %s70, %s71
      %p82 = scmp.eq.s32.totalorder %s24, 0
      %p83 = por %p81, %p82
      %p84 = scmp.ne.s32.totalorder %s70, %s71
      %p85 = scmp.eq.s32.totalorder %s25, 3
      %p86 = por %p84, %p85
      %p88 = scmp.ne.s32.totalorder %s71, %s87
      %p89 = scmp.eq.s32.totalorder %s25, 0
      %p90 = por %p88, %p89
      %s91 = ssub.s32 %s27, %s34
      %p92 = scmp.eq.s32.totalorder %s91, 0
      %s94 = sadd.s32 %s93, 1
      %s95 = scalar_select %p92, %s93, %s94
      %p98 = pneg %p92
      %p99 = scmp.eq.s32.totalorder %s19, 3
      %p100 = por %p98, %p99
      %p101 = scmp.ne.s32.totalorder %s93, %s96
      %p102 = scmp.eq.s32.totalorder %s19, 0
      %p103 = por %p101, %p102
      %p104 = scmp.ne.s32.totalorder %s93, %s96
      %p105 = scmp.eq.s32.totalorder %s24, 3
      %p106 = por %p104, %p105
      %p107 = scmp.ne.s32.totalorder %s96, %s97
      %p108 = scmp.eq.s32.totalorder %s24, 0
      %p109 = por %p107, %p108
      %p110 = scmp.ne.s32.totalorder %s96, %s97
      %p111 = scmp.eq.s32.totalorder %s25, 3
      %p112 = por %p110, %p111
      %p114 = scmp.ne.s32.totalorder %s97, %s113
      %p115 = scmp.eq.s32.totalorder %s25, 0
      %p116 = por %p114, %p115
      %s117 = ssub.s32 %s27, %s34
      %p118 = scmp.eq.s32.totalorder %s117, 0
      %s120 = sadd.s32 %s119, 1
      %s121 = scalar_select %p118, %s119, %s120
      %p124 = pneg %p118
      %p125 = scmp.eq.s32.totalorder %s19, 3
      %p126 = por %p124, %p125
      %p127 = scmp.ne.s32.totalorder %s119, %s122
      %p128 = scmp.eq.s32.totalorder %s19, 0
      %p129 = por %p127, %p128
      %p130 = scmp.ne.s32.totalorder %s119, %s122
      %p131 = scmp.eq.s32.totalorder %s24, 3
      %p132 = por %p130, %p131
      %p133 = scmp.ne.s32.totalorder %s122, %s123
      %p134 = scmp.eq.s32.totalorder %s24, 0
      %p135 = por %p133, %p134
      %p136 = scmp.ne.s32.totalorder %s122, %s123
      %p137 = scmp.eq.s32.totalorder %s25, 3
      %p138 = por %p136, %p137
      %p140 = scmp.ne.s32.totalorder %s123, %s139
      %p141 = scmp.eq.s32.totalorder %s25, 0
      %p142 = por %p140, %p141
      %s143 = ssub.s32 %s26, %s38
      %s144 = ssub.s32 %s27, %s34
      %s145 = sor.u32 %s143, %s144
      %p146 = scmp.eq.s32.totalorder %s145, 0
      %s148 = sadd.s32 %s147, 1
      %s149 = scalar_select %p146, %s147, %s148
      %p152 = pneg %p146
      %p153 = scmp.eq.s32.totalorder %s19, 3
      %p154 = por %p152, %p153
      %p155 = scmp.ne.s32.totalorder %s147, %s150
      %p156 = scmp.eq.s32.totalorder %s19, 0
      %p157 = por %p155, %p156
      %p158 = scmp.ne.s32.totalorder %s147, %s150
      %p159 = scmp.eq.s32.totalorder %s24, 3
      %p160 = por %p158, %p159
      %p161 = scmp.ne.s32.totalorder %s150, %s151
      %p162 = scmp.eq.s32.totalorder %s24, 0
      %p163 = por %p161, %p162
      %p164 = scmp.ne.s32.totalorder %s150, %s151
      %p165 = scmp.eq.s32.totalorder %s25, 3
      %p166 = por %p164, %p165
      %p168 = scmp.ne.s32.totalorder %s151, %s167
      %p169 = scmp.eq.s32.totalorder %s25, 0
      %p170 = por %p168, %p169
      %p171 = scmp.le.s32.totalorder 1, %s19
      %p172 = scmp.lt.s32.totalorder %s19, 5
      %p173 = pnand %p171, %p172
      %p174 = pneg %p173
      // Predicated region
      $region9: #{tpu_custom_call.1} parent=5 // pred_check
        _
      $region10: #{tpu_custom_call.1} parent=5 // pred_check_branch
        %176 = sbr.rel (%p173) target = $region12
      $region11: #{tpu_custom_call.1} parent=5 // pred_region
        %s177 = ssub.s32 %s19, 1
      $region12: #{tpu_custom_call.1} parent=5 // pred_fallthru
        _
      %p178 = scmp.lt.s32.totalorder %s19, 4
      // Predicated region
      $region13: #{tpu_custom_call.1} parent=5 // pred_check
        %p179 = pneg %p178
      $region14: #{tpu_custom_call.1} parent=5 // pred_check_branch
        %181 = sbr.rel (%p179) target = $region16
      $region15: #{tpu_custom_call.1} parent=5 // pred_region
        // Predicated region
        $region17: #{tpu_custom_call.1} parent=15 // pred_check
          %p182 = pneg %p51
        $region18: #{tpu_custom_call.1} parent=15 // pred_check_branch
          %184 = sbr.rel (%p182) target = $region20
        $region19: #{tpu_custom_call.1} parent=15 // pred_region
          %s185 = smul.u32 2, %s26
          %p186 = scmp.lt.s32.totalorder %s185, 3
          %s187 = scalar_select %p186, %s185, 3
          %s188 = smul.addr %s187, 8
          %s189 = scalar_lea.vmem %s0, %s188
          %s190 = smul.u32 2, %s26
        $region20: #{tpu_custom_call.1} parent=15 // pred_fallthru
          _
        // Predicated region
        $region21: #{tpu_custom_call.1} parent=15 // pred_check
          %p191 = pneg %p77
        $region22: #{tpu_custom_call.1} parent=15 // pred_check_branch
          %193 = sbr.rel (%p191) target = $region24
        $region23: #{tpu_custom_call.1} parent=15 // pred_region
          %s194 = smul.u32 2, %s26
          %p195 = scmp.lt.s32.totalorder %s194, 3
          %s196 = scalar_select %p195, %s194, 3
          %s197 = smul.addr %s196, 2
          %s198 = smul.addr %s197, 4
          %s199 = scalar_lea.vmem %s1, %s198
          %s200 = smul.u32 2, %s26
        $region24: #{tpu_custom_call.1} parent=15 // pred_fallthru
          _
        // Predicated region
        $region25: #{tpu_custom_call.1} parent=15 // pred_check
          %p201 = pneg %p103
        $region26: #{tpu_custom_call.1} parent=15 // pred_check_branch
          %203 = sbr.rel (%p201) target = $region28
        $region27: #{tpu_custom_call.1} parent=15 // pred_region
          %s204 = sand.u32 %s93, 1
          %s205 = scalar_lea.sflag [#allocation3], %s204
          %s206 = sand.u32 %s93, 1
          %s207 = smul.addr %s206, 512
          %s208 = scalar_lea.vmem [#allocation2], %s207
          %s209 = smul.u32 64, %s27
          %s211 = ssub.s32 8192, 8192
          %212 = vsyncadd %s205, %s211
          %s213 = smul.addr %s209, 2
          %s214 = smul.addr %s213, 64
          %s215 = scalar_lea.hbm %s2, %s214
          %s216 = sshll.u32 %s208, 4
          %s217 = int_to_ptr.vmem [resolvable:$true] %s216
          %222 = dma.hbm_to_vmem [thread:$0]  %s215, 8192, %s217, %s205, 128, 128, 8
        $region28: #{tpu_custom_call.1} parent=15 // pred_fallthru
          _
        // Predicated region
        $region29: #{tpu_custom_call.1} parent=15 // pred_check
          %p223 = pneg %p129
        $region30: #{tpu_custom_call.1} parent=15 // pred_check_branch
          %225 = sbr.rel (%p223) target = $region32
        $region31: #{tpu_custom_call.1} parent=15 // pred_region
          %s226 = sand.u32 %s119, 1
          %s227 = scalar_lea.sflag [#allocation6], %s226
          %s228 = sand.u32 %s119, 1
          %s229 = smul.addr %s228, 4
          %s230 = scalar_lea.vmem [#allocation5], %s229
          %s231 = smul.u32 4, %s27
          %s233 = ssub.s32 64, 64
          %234 = vsyncadd %s227, %s233
          %s235 = smul.addr %s231, 16
          %s236 = scalar_lea.hbm %s3, %s235
          %s238 = sshll.u32 %s230, 4
          %s239 = int_to_ptr.vmem [resolvable:$true] %s238
          %241 = dma.hbm_to_vmem [thread:$0]  %s236, 64, %s239, %s227
        $region32: #{tpu_custom_call.1} parent=15 // pred_fallthru
          _
      $region16: #{tpu_custom_call.1} parent=5 // pred_fallthru
        _
      %p242 = scmp.le.s32.totalorder 1, %s19
      %p243 = scmp.lt.s32.totalorder %s19, 5
      %p244 = pnand %p242, %p243
      %p245 = pneg %p244
      // Predicated region
      $region33: #{tpu_custom_call.1} parent=5 // pred_check
        _
      $region34: #{tpu_custom_call.1} parent=5 // pred_check_branch
        %247 = sbr.rel (%p244) target = $region36
      $region35: #{tpu_custom_call.1} parent=5 // pred_region
        %s248 = ssub.s32 %s19, 1
        %s249 = sand.u32 %s96, 1
        %s250 = scalar_lea.sflag [#allocation3], %s249
        %s251 = sand.u32 %s96, 1
        %s252 = smul.addr %s251, 512
        %s253 = scalar_lea.vmem [#allocation2], %s252
        // Predicated region
        $region37: #{tpu_custom_call.1} parent=35 // pred_check
          %p254 = pneg %p109
        $region38: #{tpu_custom_call.1} parent=35 // pred_check_branch
          %256 = sbr.rel (%p254) target = $region40
        $region39: #{tpu_custom_call.1} parent=35 // pred_region
          %257 = dma.done %s250, 8192
        $region40: #{tpu_custom_call.1} parent=35 // pred_fallthru
          _
        %s258 = sand.u32 %s122, 1
        %s259 = scalar_lea.sflag [#allocation6], %s258
        %s260 = sand.u32 %s122, 1
        %s261 = smul.addr %s260, 4
        %s262 = scalar_lea.vmem [#allocation5], %s261
        // Predicated region
        $region41: #{tpu_custom_call.1} parent=35 // pred_check
          %p263 = pneg %p135
        $region42: #{tpu_custom_call.1} parent=35 // pred_check_branch
          %265 = sbr.rel (%p263) target = $region44
        $region43: #{tpu_custom_call.1} parent=35 // pred_region
          %266 = dma.done %s259, 64
        $region44: #{tpu_custom_call.1} parent=35 // pred_fallthru
          _
        %s267 = smul.u32 2, %s28
        %p268 = scmp.lt.s32.totalorder %s267, 3
        %s269 = scalar_select %p268, %s267, 3
        %s270 = smul.addr %s269, 8
        %s271 = scalar_lea.vmem %s0, %s270
        %p272 = pneg %p57
        %p273 = pneg %p54
        %s274 = smul.u32 2, %s28
        %p275 = scmp.lt.s32.totalorder %s274, 3
        %s276 = scalar_select %p275, %s274, 3
        %s277 = smul.addr %s276, 2
        %s278 = smul.addr %s277, 4
        %s279 = scalar_lea.vmem %s1, %s278
        %p280 = pneg %p83
        %p281 = pneg %p80
        %s282 = sand.u32 %s96, 1
        %s283 = scalar_lea.sflag [#allocation3], %s282
        %s284 = sand.u32 %s96, 1
        %s285 = smul.addr %s284, 512
        %s286 = scalar_lea.vmem [#allocation2], %s285
        %p287 = pneg %p109
        %p288 = pneg %p106
        %s289 = sand.u32 %s122, 1
        %s290 = scalar_lea.sflag [#allocation6], %s289
        %s291 = sand.u32 %s122, 1
        %s292 = smul.addr %s291, 4
        %s293 = scalar_lea.vmem [#allocation5], %s292
        %p294 = pneg %p135
        %p295 = pneg %p132
        %p296 = pneg %p163
        %p297 = pneg %p160
        %s298 = sand.u32 %s150, 1
        %s299 = scalar_lea.sflag [#allocation4], %s298
        %s300 = sand.u32 %s150, 1
        %s301 = smul.addr %s300, 64
        %s302 = scalar_lea.vmem [#allocation7], %s301
        %s303 = smul.u32 2, %s28
        %p304 = scmp.lt.s32.totalorder %s303, 3
        %s305 = scalar_select %p304, %s303, 3
        %s306 = smul.addr %s305, 8
        %s307 = scalar_lea.vmem %s0, %s306
        %s308 = smul.u32 2, %s28
        %s309 = smul.u32 2, %s28
        %p310 = scmp.lt.s32.totalorder %s309, 3
        %s311 = scalar_select %p310, %s309, 3
        %s312 = smul.addr %s311, 2
        %s313 = smul.addr %s312, 4
        %s314 = scalar_lea.vmem %s1, %s313
        %s315 = smul.u32 2, %s28
        %s316 = smul.u32 64, %s29
        %s317 = smul.u32 4, %s29
        %s318 = smul.u32 2, %s28
        %s319 = smul.u32 4, %s29
        %v320 = vld [vmem:[%s314] sm:$0xff]
        %v321 = vld [vmem:[%s314 + $0x8] sm:$0xff]
        %v322 = vld [vmem:[%s253] sm:$0xff]
        %v323 = vld [vmem:[%s253 + $0x8] sm:$0xff]
        %v324 = vld [vmem:[%s253 + $0x10] sm:$0xff]
        %v325 = vld [vmem:[%s253 + $0x18] sm:$0xff]
        %v326 = vld [vmem:[%s253 + $0x20] sm:$0xff]
        %v327 = vld [vmem:[%s253 + $0x28] sm:$0xff]
        %v328 = vld [vmem:[%s253 + $0x30] sm:$0xff]
        %v329 = vld [vmem:[%s253 + $0x38] sm:$0xff]
        %v330 = vld [vmem:[%s253 + $0x40] sm:$0xff]
        %v331 = vld [vmem:[%s253 + $0x48] sm:$0xff]
        %v332 = vld [vmem:[%s253 + $0x50] sm:$0xff]
        %v333 = vld [vmem:[%s253 + $0x58] sm:$0xff]
        %v334 = vld [vmem:[%s253 + $0x60] sm:$0xff]
        %v335 = vld [vmem:[%s253 + $0x68] sm:$0xff]
        %v336 = vld [vmem:[%s253 + $0x70] sm:$0xff]
        %v337 = vld [vmem:[%s253 + $0x78] sm:$0xff]
        %v338 = vld [vmem:[%s253 + $0x80] sm:$0xff]
        %v339 = vld [vmem:[%s253 + $0x88] sm:$0xff]
        %v340 = vld [vmem:[%s253 + $0x90] sm:$0xff]
        %v341 = vld [vmem:[%s253 + $0x98] sm:$0xff]
        %v342 = vld [vmem:[%s253 + $0xa0] sm:$0xff]
        %v343 = vld [vmem:[%s253 + $0xa8] sm:$0xff]
        %v344 = vld [vmem:[%s253 + $0xb0] sm:$0xff]
        %v345 = vld [vmem:[%s253 + $0xb8] sm:$0xff]
        %v346 = vld [vmem:[%s253 + $0xc0] sm:$0xff]
        %v347 = vld [vmem:[%s253 + $0xc8] sm:$0xff]
        %v348 = vld [vmem:[%s253 + $0xd0] sm:$0xff]
        %v349 = vld [vmem:[%s253 + $0xd8] sm:$0xff]
        %v350 = vld [vmem:[%s253 + $0xe0] sm:$0xff]
        %v351 = vld [vmem:[%s253 + $0xe8] sm:$0xff]
        %v352 = vld [vmem:[%s253 + $0xf0] sm:$0xff]
        %v353 = vld [vmem:[%s253 + $0xf8] sm:$0xff]
        %v354 = vld [vmem:[%s253 + $0x100] sm:$0xff]
        %v355 = vld [vmem:[%s253 + $0x108] sm:$0xff]
        %v356 = vld [vmem:[%s253 + $0x110] sm:$0xff]
        %v357 = vld [vmem:[%s253 + $0x118] sm:$0xff]
        %v358 = vld [vmem:[%s253 + $0x120] sm:$0xff]
        %v359 = vld [vmem:[%s253 + $0x128] sm:$0xff]
        %v360 = vld [vmem:[%s253 + $0x130] sm:$0xff]
        %v361 = vld [vmem:[%s253 + $0x138] sm:$0xff]
        %v362 = vld [vmem:[%s253 + $0x140] sm:$0xff]
        %v363 = vld [vmem:[%s253 + $0x148] sm:$0xff]
        %v364 = vld [vmem:[%s253 + $0x150] sm:$0xff]
        %v365 = vld [vmem:[%s253 + $0x158] sm:$0xff]
        %v366 = vld [vmem:[%s253 + $0x160] sm:$0xff]
        %v367 = vld [vmem:[%s253 + $0x168] sm:$0xff]
        %v368 = vld [vmem:[%s253 + $0x170] sm:$0xff]
        %v369 = vld [vmem:[%s253 + $0x178] sm:$0xff]
        %v370 = vld [vmem:[%s253 + $0x180] sm:$0xff]
        %v371 = vld [vmem:[%s253 + $0x188] sm:$0xff]
        %v372 = vld [vmem:[%s253 + $0x190] sm:$0xff]
        %v373 = vld [vmem:[%s253 + $0x198] sm:$0xff]
        %v374 = vld [vmem:[%s253 + $0x1a0] sm:$0xff]
        %v375 = vld [vmem:[%s253 + $0x1a8] sm:$0xff]
        %v376 = vld [vmem:[%s253 + $0x1b0] sm:$0xff]
        %v377 = vld [vmem:[%s253 + $0x1b8] sm:$0xff]
        %v378 = vld [vmem:[%s253 + $0x1c0] sm:$0xff]
        %v379 = vld [vmem:[%s253 + $0x1c8] sm:$0xff]
        %v380 = vld [vmem:[%s253 + $0x1d0] sm:$0xff]
        %v381 = vld [vmem:[%s253 + $0x1d8] sm:$0xff]
        %v382 = vld [vmem:[%s253 + $0x1e0] sm:$0xff]
        %v383 = vld [vmem:[%s253 + $0x1e8] sm:$0xff]
        %v384 = vld [vmem:[%s253 + $0x1f0] sm:$0xff]
        %v385 = vld [vmem:[%s253 + $0x1f8] sm:$0xff]
        %v388 = vunpack.c.l.b16 %v320
        %v389 = vunpack.c.h.b16 %v320
        %v390 = vunpack.c.l.b16 %v321
        %v391 = vunpack.c.h.b16 %v321
        %v392 = vpack.c.b16 %v390, %v388
        %v393 = vpack.c.b16 %v391, %v389
        %v460 = vunpack.c.l.b16 %v322
        %v461 = vunpack.c.h.b16 %v322
        %v462 = vunpack.c.l.b16 %v323
        %v463 = vunpack.c.h.b16 %v323
        %v464 = vunpack.c.l.b16 %v324
        %v465 = vunpack.c.h.b16 %v324
        %v466 = vunpack.c.l.b16 %v325
        %v467 = vunpack.c.h.b16 %v325
        %v468 = vunpack.c.l.b16 %v326
        %v469 = vunpack.c.h.b16 %v326
        %v470 = vunpack.c.l.b16 %v327
        %v471 = vunpack.c.h.b16 %v327
        %v472 = vunpack.c.l.b16 %v328
        %v473 = vunpack.c.h.b16 %v328
        %v474 = vunpack.c.l.b16 %v329
        %v475 = vunpack.c.h.b16 %v329
        %v476 = vunpack.c.l.b16 %v330
        %v477 = vunpack.c.h.b16 %v330
        %v478 = vunpack.c.l.b16 %v331
        %v479 = vunpack.c.h.b16 %v331
        %v480 = vunpack.c.l.b16 %v332
        %v481 = vunpack.c.h.b16 %v332
        %v482 = vunpack.c.l.b16 %v333
        %v483 = vunpack.c.h.b16 %v333
        %v484 = vunpack.c.l.b16 %v334
        %v485 = vunpack.c.h.b16 %v334
        %v486 = vunpack.c.l.b16 %v335
        %v487 = vunpack.c.h.b16 %v335
        %v488 = vunpack.c.l.b16 %v336
        %v489 = vunpack.c.h.b16 %v336
        %v490 = vunpack.c.l.b16 %v337
        %v491 = vunpack.c.h.b16 %v337
        %v492 = vunpack.c.l.b16 %v338
        %v493 = vunpack.c.h.b16 %v338
        %v494 = vunpack.c.l.b16 %v339
        %v495 = vunpack.c.h.b16 %v339
        %v496 = vunpack.c.l.b16 %v340
        %v497 = vunpack.c.h.b16 %v340
        %v498 = vunpack.c.l.b16 %v341
        %v499 = vunpack.c.h.b16 %v341
        %v500 = vunpack.c.l.b16 %v342
        %v501 = vunpack.c.h.b16 %v342
        %v502 = vunpack.c.l.b16 %v343
        %v503 = vunpack.c.h.b16 %v343
        %v504 = vunpack.c.l.b16 %v344
        %v505 = vunpack.c.h.b16 %v344
        %v506 = vunpack.c.l.b16 %v345
        %v507 = vunpack.c.h.b16 %v345
        %v508 = vunpack.c.l.b16 %v346
        %v509 = vunpack.c.h.b16 %v346
        %v510 = vunpack.c.l.b16 %v347
        %v511 = vunpack.c.h.b16 %v347
        %v512 = vunpack.c.l.b16 %v348
        %v513 = vunpack.c.h.b16 %v348
        %v514 = vunpack.c.l.b16 %v349
        %v515 = vunpack.c.h.b16 %v349
        %v516 = vunpack.c.l.b16 %v350
        %v517 = vunpack.c.h.b16 %v350
        %v518 = vunpack.c.l.b16 %v351
        %v519 = vunpack.c.h.b16 %v351
        %v520 = vunpack.c.l.b16 %v352
        %v521 = vunpack.c.h.b16 %v352
        %v522 = vunpack.c.l.b16 %v353
        %v523 = vunpack.c.h.b16 %v353
        %v524 = vunpack.c.l.b16 %v354
        %v525 = vunpack.c.h.b16 %v354
        %v526 = vunpack.c.l.b16 %v355
        %v527 = vunpack.c.h.b16 %v355
        %v528 = vunpack.c.l.b16 %v356
        %v529 = vunpack.c.h.b16 %v356
        %v530 = vunpack.c.l.b16 %v357
        %v531 = vunpack.c.h.b16 %v357
        %v532 = vunpack.c.l.b16 %v358
        %v533 = vunpack.c.h.b16 %v358
        %v534 = vunpack.c.l.b16 %v359
        %v535 = vunpack.c.h.b16 %v359
        %v536 = vunpack.c.l.b16 %v360
        %v537 = vunpack.c.h.b16 %v360
        %v538 = vunpack.c.l.b16 %v361
        %v539 = vunpack.c.h.b16 %v361
        %v540 = vunpack.c.l.b16 %v362
        %v541 = vunpack.c.h.b16 %v362
        %v542 = vunpack.c.l.b16 %v363
        %v543 = vunpack.c.h.b16 %v363
        %v544 = vunpack.c.l.b16 %v364
        %v545 = vunpack.c.h.b16 %v364
        %v546 = vunpack.c.l.b16 %v365
        %v547 = vunpack.c.h.b16 %v365
        %v548 = vunpack.c.l.b16 %v366
        %v549 = vunpack.c.h.b16 %v366
        %v550 = vunpack.c.l.b16 %v367
        %v551 = vunpack.c.h.b16 %v367
        %v552 = vunpack.c.l.b16 %v368
        %v553 = vunpack.c.h.b16 %v368
        %v554 = vunpack.c.l.b16 %v369
        %v555 = vunpack.c.h.b16 %v369
        %v556 = vunpack.c.l.b16 %v370
        %v557 = vunpack.c.h.b16 %v370
        %v558 = vunpack.c.l.b16 %v371
        %v559 = vunpack.c.h.b16 %v371
        %v560 = vunpack.c.l.b16 %v372
        %v561 = vunpack.c.h.b16 %v372
        %v562 = vunpack.c.l.b16 %v373
        %v563 = vunpack.c.h.b16 %v373
        %v564 = vunpack.c.l.b16 %v374
        %v565 = vunpack.c.h.b16 %v374
        %v566 = vunpack.c.l.b16 %v375
        %v567 = vunpack.c.h.b16 %v375
        %v568 = vunpack.c.l.b16 %v376
        %v569 = vunpack.c.h.b16 %v376
        %v570 = vunpack.c.l.b16 %v377
        %v571 = vunpack.c.h.b16 %v377
        %v572 = vunpack.c.l.b16 %v378
        %v573 = vunpack.c.h.b16 %v378
        %v574 = vunpack.c.l.b16 %v379
        %v575 = vunpack.c.h.b16 %v379
        %v576 = vunpack.c.l.b16 %v380
        %v577 = vunpack.c.h.b16 %v380
        %v578 = vunpack.c.l.b16 %v381
        %v579 = vunpack.c.h.b16 %v381
        %v580 = vunpack.c.l.b16 %v382
        %v581 = vunpack.c.h.b16 %v382
        %v582 = vunpack.c.l.b16 %v383
        %v583 = vunpack.c.h.b16 %v383
        %v584 = vunpack.c.l.b16 %v384
        %v585 = vunpack.c.h.b16 %v384
        %v586 = vunpack.c.l.b16 %v385
        %v587 = vunpack.c.h.b16 %v385
        %v588 = vpack.c.b16 %v462, %v460
        %v589 = vpack.c.b16 %v463, %v461
        %v590 = vpack.c.b16 %v466, %v464
        %v591 = vpack.c.b16 %v467, %v465
        %v592 = vpack.c.b16 %v470, %v468
        %v593 = vpack.c.b16 %v471, %v469
        %v594 = vpack.c.b16 %v474, %v472
        %v595 = vpack.c.b16 %v475, %v473
        %v596 = vpack.c.b16 %v478, %v476
        %v597 = vpack.c.b16 %v479, %v477
        %v598 = vpack.c.b16 %v482, %v480
        %v599 = vpack.c.b16 %v483, %v481
        %v600 = vpack.c.b16 %v486, %v484
        %v601 = vpack.c.b16 %v487, %v485
        %v602 = vpack.c.b16 %v490, %v488
        %v603 = vpack.c.b16 %v491, %v489
        %v604 = vpack.c.b16 %v494, %v492
        %v605 = vpack.c.b16 %v495, %v493
        %v606 = vpack.c.b16 %v498, %v496
        %v607 = vpack.c.b16 %v499, %v497
        %v608 = vpack.c.b16 %v502, %v500
        %v609 = vpack.c.b16 %v503, %v501
        %v610 = vpack.c.b16 %v506, %v504
        %v611 = vpack.c.b16 %v507, %v505
        %v612 = vpack.c.b16 %v510, %v508
        %v613 = vpack.c.b16 %v511, %v509
        %v614 = vpack.c.b16 %v514, %v512
        %v615 = vpack.c.b16 %v515, %v513
        %v616 = vpack.c.b16 %v518, %v516
        %v617 = vpack.c.b16 %v519, %v517
        %v618 = vpack.c.b16 %v522, %v520
        %v619 = vpack.c.b16 %v523, %v521
        %v620 = vpack.c.b16 %v526, %v524
        %v621 = vpack.c.b16 %v527, %v525
        %v622 = vpack.c.b16 %v530, %v528
        %v623 = vpack.c.b16 %v531, %v529
        %v624 = vpack.c.b16 %v534, %v532
        %v625 = vpack.c.b16 %v535, %v533
        %v626 = vpack.c.b16 %v538, %v536
        %v627 = vpack.c.b16 %v539, %v537
        %v628 = vpack.c.b16 %v542, %v540
        %v629 = vpack.c.b16 %v543, %v541
        %v630 = vpack.c.b16 %v546, %v544
        %v631 = vpack.c.b16 %v547, %v545
        %v632 = vpack.c.b16 %v550, %v548
        %v633 = vpack.c.b16 %v551, %v549
        %v634 = vpack.c.b16 %v554, %v552
        %v635 = vpack.c.b16 %v555, %v553
        %v636 = vpack.c.b16 %v558, %v556
        %v637 = vpack.c.b16 %v559, %v557
        %v638 = vpack.c.b16 %v562, %v560
        %v639 = vpack.c.b16 %v563, %v561
        %v640 = vpack.c.b16 %v566, %v564
        %v641 = vpack.c.b16 %v567, %v565
        %v642 = vpack.c.b16 %v570, %v568
        %v643 = vpack.c.b16 %v571, %v569
        %v644 = vpack.c.b16 %v574, %v572
        %v645 = vpack.c.b16 %v575, %v573
        %v646 = vpack.c.b16 %v578, %v576
        %v647 = vpack.c.b16 %v579, %v577
        %v648 = vpack.c.b16 %v582, %v580
        %v649 = vpack.c.b16 %v583, %v581
        %v650 = vpack.c.b16 %v586, %v584
        %v651 = vpack.c.b16 %v587, %v585
        %716 = vmatprep.subr.bf16.mxu0 %v603
        %717 = vmatpush1.bf16.xpose.msra.mxu0 %v602
        %718 = vmatprep.subr.bf16.mxu0 %v601
        %719 = vmatpush1.bf16.xpose.msra.mxu0 %v600
        %720 = vmatprep.subr.bf16.mxu0 %v599
        %721 = vmatpush1.bf16.xpose.msra.mxu0 %v598
        %722 = vmatprep.subr.bf16.mxu0 %v597
        %723 = vmatpush1.bf16.xpose.msra.mxu0 %v596
        %724 = vmatprep.subr.bf16.mxu0 %v595
        %725 = vmatpush1.bf16.xpose.msra.mxu0 %v594
        %726 = vmatprep.subr.bf16.mxu0 %v593
        %727 = vmatpush1.bf16.xpose.msra.mxu0 %v592
        %728 = vmatprep.subr.bf16.mxu0 %v591
        %729 = vmatpush1.bf16.xpose.msra.mxu0 %v590
        %730 = vmatprep.subr.bf16.mxu0 %v589
        %731 = vmatpush1.bf16.xpose.msra.mxu0 %v588
        %732 = vmatprep.subr.bf16.mxu0 %v619
        %733 = vmatpush2.bf16.xpose.msra.mxu0 %v618
        %734 = vmatprep.subr.bf16.mxu0 %v617
        %735 = vmatpush2.bf16.xpose.msra.mxu0 %v616
        %736 = vmatprep.subr.bf16.mxu0 %v615
        %737 = vmatpush2.bf16.xpose.msra.mxu0 %v614
        %738 = vmatprep.subr.bf16.mxu0 %v613
        %739 = vmatpush2.bf16.xpose.msra.mxu0 %v612
        %740 = vmatprep.subr.bf16.mxu0 %v611
        %741 = vmatpush2.bf16.xpose.msra.mxu0 %v610
        %742 = vmatprep.subr.bf16.mxu0 %v609
        %743 = vmatpush2.bf16.xpose.msra.mxu0 %v608
        %744 = vmatprep.subr.bf16.mxu0 %v607
        %745 = vmatpush2.bf16.xpose.msra.mxu0 %v606
        %746 = vmatprep.subr.bf16.mxu0 %v605
        %747 = vmatpush2.bf16.xpose.msra.mxu0 %v604
        %748 = vmatprep.mubr.bf16.mxu0 %v393
        %749 = vmatmul.mubr.bf16.gmra.mxu0 %v392
        %v750 = vpop.f32.mrf.mxu0
        %v751 = vadd.f32 0.0, %v750
        %v752 = vpop.f32.mrf.mxu0
        %v753 = vadd.f32 0.0, %v752
        %v754 = vpop.f32.mrf.mxu0
        %v755 = vadd.f32 0.0, %v754
        %v756 = vpop.f32.mrf.mxu0
        %v757 = vadd.f32 0.0, %v756
        %758 = vdwg.mxu0
        %759 = vmatprep.subr.bf16.mxu0 %v635
        %760 = vmatpush1.bf16.xpose.msra.mxu0 %v634
        %761 = vmatprep.subr.bf16.mxu0 %v633
        %762 = vmatpush1.bf16.xpose.msra.mxu0 %v632
        %763 = vmatprep.subr.bf16.mxu0 %v631
        %764 = vmatpush1.bf16.xpose.msra.mxu0 %v630
        %765 = vmatprep.subr.bf16.mxu0 %v629
        %766 = vmatpush1.bf16.xpose.msra.mxu0 %v628
        %767 = vmatprep.subr.bf16.mxu0 %v627
        %768 = vmatpush1.bf16.xpose.msra.mxu0 %v626
        %769 = vmatprep.subr.bf16.mxu0 %v625
        %770 = vmatpush1.bf16.xpose.msra.mxu0 %v624
        %771 = vmatprep.subr.bf16.mxu0 %v623
        %772 = vmatpush1.bf16.xpose.msra.mxu0 %v622
        %773 = vmatprep.subr.bf16.mxu0 %v621
        %774 = vmatpush1.bf16.xpose.msra.mxu0 %v620
        %775 = vmatprep.subr.bf16.mxu0 %v651
        %776 = vmatpush2.bf16.xpose.msra.mxu0 %v650
        %777 = vmatprep.subr.bf16.mxu0 %v649
        %778 = vmatpush2.bf16.xpose.msra.mxu0 %v648
        %779 = vmatprep.subr.bf16.mxu0 %v647
        %780 = vmatpush2.bf16.xpose.msra.mxu0 %v646
        %781 = vmatprep.subr.bf16.mxu0 %v645
        %782 = vmatpush2.bf16.xpose.msra.mxu0 %v644
        %783 = vmatprep.subr.bf16.mxu0 %v643
        %784 = vmatpush2.bf16.xpose.msra.mxu0 %v642
        %785 = vmatprep.subr.bf16.mxu0 %v641
        %786 = vmatpush2.bf16.xpose.msra.mxu0 %v640
        %787 = vmatprep.subr.bf16.mxu0 %v639
        %788 = vmatpush2.bf16.xpose.msra.mxu0 %v638
        %789 = vmatprep.subr.bf16.mxu0 %v637
        %790 = vmatpush2.bf16.xpose.msra.mxu0 %v636
        %791 = vmatprep.mubr.bf16.mxu0 %v393
        %792 = vmatmul.mubr.bf16.gmra.mxu0 %v392
        %v793 = vpop.f32.mrf.mxu0
        %v794 = vadd.f32 0.0, %v793
        %v795 = vpop.f32.mrf.mxu0
        %v796 = vadd.f32 0.0, %v795
        %v797 = vpop.f32.mrf.mxu0
        %v798 = vadd.f32 0.0, %v797
        %v799 = vpop.f32.mrf.mxu0
        %v800 = vadd.f32 0.0, %v799
        %801 = vdwg.mxu0
        %v802 = vld [vmem:[%s262] sm:$0xf]
        %v804 = vlaneseq
        %v805 = vshrl.u32 %v804, 7
        %v806 = vsub.s32 0, %v805
        %v807 = vrot.slane %v802, %v806
        %v808 = vlaneseq
        %v809 = vshrl.u32 %v808, 7
        %v810 = vsub.s32 1, %v809
        %v811 = vrot.slane %v802, %v810
        %v812 = vlaneseq
        %v813 = vshrl.u32 %v812, 7
        %v814 = vsub.s32 2, %v813
        %v815 = vrot.slane %v802, %v814
        %v816 = vlaneseq
        %v817 = vshrl.u32 %v816, 7
        %v818 = vsub.s32 3, %v817
        %v819 = vrot.slane %v802, %v818
        %v824 = vmul.f32 %v751, %v807
        %v825 = vmul.f32 %v753, %v811
        %v826 = vmul.f32 %v794, %v815
        %v827 = vmul.f32 %v796, %v819
        %v828 = vmul.f32 %v755, %v807
        %v829 = vmul.f32 %v757, %v811
        %v830 = vmul.f32 %v798, %v815
        %v831 = vmul.f32 %v800, %v819
        %v832 = vmul.f32 %v824, %v824
        %v833 = vmul.f32 %v825, %v825
        %v834 = vmul.f32 %v826, %v826
        %v835 = vmul.f32 %v827, %v827
        %v836 = vmul.f32 %v828, %v828
        %v837 = vmul.f32 %v829, %v829
        %v838 = vmul.f32 %v830, %v830
        %v839 = vmul.f32 %v831, %v831
        %v840 = vsub.f32 1.0, %v832
        %v841 = vsub.f32 1.0, %v833
        %v842 = vsub.f32 1.0, %v834
        %v843 = vsub.f32 1.0, %v835
        %v844 = vsub.f32 1.0, %v836
        %v845 = vsub.f32 1.0, %v837
        %v846 = vsub.f32 1.0, %v838
        %v847 = vsub.f32 1.0, %v839
        %v848 = vmax.f32 %v840, 0.0
        %v849 = vmax.f32 %v841, 0.0
        %v850 = vmax.f32 %v842, 0.0
        %v851 = vmax.f32 %v843, 0.0
        %v852 = vmax.f32 %v844, 0.0
        %v853 = vmax.f32 %v845, 0.0
        %v854 = vmax.f32 %v846, 0.0
        %v855 = vmax.f32 %v847, 0.0
        %v856 = vrsqrt.pop %v848
        %v857 = vmul.f32 %v848, %v856
        %vm858 = vcmp.eq.f32.partialorder %v848, inf
        %v859 = vsel %vm858, %v848, %v857
        %vm860 = vcmp.eq.f32.partialorder %v848, 0.0
        %v861 = vand.u32 %v848, 2147483648
        %v862 = vsel %vm860, %v861, %v859
        %v863 = vrsqrt.pop %v849
        %v864 = vmul.f32 %v849, %v863
        %vm865 = vcmp.eq.f32.partialorder %v849, inf
        %v866 = vsel %vm865, %v849, %v864
        %vm867 = vcmp.eq.f32.partialorder %v849, 0.0
        %v868 = vand.u32 %v849, 2147483648
        %v869 = vsel %vm867, %v868, %v866
        %v870 = vrsqrt.pop %v850
        %v871 = vmul.f32 %v850, %v870
        %vm872 = vcmp.eq.f32.partialorder %v850, inf
        %v873 = vsel %vm872, %v850, %v871
        %vm874 = vcmp.eq.f32.partialorder %v850, 0.0
        %v875 = vand.u32 %v850, 2147483648
        %v876 = vsel %vm874, %v875, %v873
        %v877 = vrsqrt.pop %v851
        %v878 = vmul.f32 %v851, %v877
        %vm879 = vcmp.eq.f32.partialorder %v851, inf
        %v880 = vsel %vm879, %v851, %v878
        %vm881 = vcmp.eq.f32.partialorder %v851, 0.0
        %v882 = vand.u32 %v851, 2147483648
        %v883 = vsel %vm881, %v882, %v880
        %v884 = vrsqrt.pop %v852
        %v885 = vmul.f32 %v852, %v884
        %vm886 = vcmp.eq.f32.partialorder %v852, inf
        %v887 = vsel %vm886, %v852, %v885
        %vm888 = vcmp.eq.f32.partialorder %v852, 0.0
        %v889 = vand.u32 %v852, 2147483648
        %v890 = vsel %vm888, %v889, %v887
        %v891 = vrsqrt.pop %v853
        %v892 = vmul.f32 %v853, %v891
        %vm893 = vcmp.eq.f32.partialorder %v853, inf
        %v894 = vsel %vm893, %v853, %v892
        %vm895 = vcmp.eq.f32.partialorder %v853, 0.0
        %v896 = vand.u32 %v853, 2147483648
        %v897 = vsel %vm895, %v896, %v894
        %v898 = vrsqrt.pop %v854
        %v899 = vmul.f32 %v854, %v898
        %vm900 = vcmp.eq.f32.partialorder %v854, inf
        %v901 = vsel %vm900, %v854, %v899
        %vm902 = vcmp.eq.f32.partialorder %v854, 0.0
        %v903 = vand.u32 %v854, 2147483648
        %v904 = vsel %vm902, %v903, %v901
        %v905 = vrsqrt.pop %v855
        %v906 = vmul.f32 %v855, %v905
        %vm907 = vcmp.eq.f32.partialorder %v855, inf
        %v908 = vsel %vm907, %v855, %v906
        %vm909 = vcmp.eq.f32.partialorder %v855, 0.0
        %v910 = vand.u32 %v855, 2147483648
        %v911 = vsel %vm909, %v910, %v908
        %v912 = vmul.f32 %v824, 0.87758255
        %v913 = vmul.f32 %v825, 0.87758255
        %v914 = vmul.f32 %v826, 0.87758255
        %v915 = vmul.f32 %v827, 0.87758255
        %v916 = vmul.f32 %v828, 0.87758255
        %v917 = vmul.f32 %v829, 0.87758255
        %v918 = vmul.f32 %v830, 0.87758255
        %v919 = vmul.f32 %v831, 0.87758255
        %v920 = vmul.f32 %v862, 0.47942555
        %v921 = vmul.f32 %v869, 0.47942555
        %v922 = vmul.f32 %v876, 0.47942555
        %v923 = vmul.f32 %v883, 0.47942555
        %v924 = vmul.f32 %v890, 0.47942555
        %v925 = vmul.f32 %v897, 0.47942555
        %v926 = vmul.f32 %v904, 0.47942555
        %v927 = vmul.f32 %v911, 0.47942555
        %v928 = vsub.f32 %v912, %v920
        %v929 = vsub.f32 %v913, %v921
        %v930 = vsub.f32 %v914, %v922
        %v931 = vsub.f32 %v915, %v923
        %v932 = vsub.f32 %v916, %v924
        %v933 = vsub.f32 %v917, %v925
        %v934 = vsub.f32 %v918, %v926
        %v935 = vsub.f32 %v919, %v927
        %vm936 = vcmp.gt.f32.partialorder %v824, -0.87758255
        %vm937 = vcmp.gt.f32.partialorder %v825, -0.87758255
        %vm938 = vcmp.gt.f32.partialorder %v826, -0.87758255
        %vm939 = vcmp.gt.f32.partialorder %v827, -0.87758255
        %vm940 = vcmp.gt.f32.partialorder %v828, -0.87758255
        %vm941 = vcmp.gt.f32.partialorder %v829, -0.87758255
        %vm942 = vcmp.gt.f32.partialorder %v830, -0.87758255
        %vm943 = vcmp.gt.f32.partialorder %v831, -0.87758255
        %v944 = vsub.f32 %v824, 0.23971277
        %v945 = vsub.f32 %v825, 0.23971277
        %v946 = vsub.f32 %v826, 0.23971277
        %v947 = vsub.f32 %v827, 0.23971277
        %v948 = vsub.f32 %v828, 0.23971277
        %v949 = vsub.f32 %v829, 0.23971277
        %v950 = vsub.f32 %v830, 0.23971277
        %v951 = vsub.f32 %v831, 0.23971277
        %v952 = vsel %vm936, %v928, %v944
        %v953 = vsel %vm937, %v929, %v945
        %v954 = vsel %vm938, %v930, %v946
        %v955 = vsel %vm939, %v931, %v947
        %v956 = vsel %vm940, %v932, %v948
        %v957 = vsel %vm941, %v933, %v949
        %v958 = vsel %vm942, %v934, %v950
        %v959 = vsel %vm943, %v935, %v951
        %v960 = vld [vmem:[%s307] sm:$0xff]
        %v961 = vld [vmem:[%s307 + $0x8] sm:$0xff]
        %s962 = smul.u32 %s29, 512
        %v963 = vstv %s962
        %v964 = vsub.s32 %v960, %v963
        %v965 = vsub.s32 %v961, %v963
        %v966 = vlaneseq
        %v967 = vand.u32 %v966, 127
        %v968 = vadd.s32 %v967, 128
        %v969 = vadd.s32 %v967, 256
        %v970 = vadd.s32 %v967, 384
        %971 = vset.pattern.permute.xlu0 0
        %972 = vperm.xlu0 %971, %v964
        %v973 = vpop.permute.xlu0 %972
        %974 = vset.pattern.permute.xlu0 0
        %975 = vperm.xlu0 %974, %v965
        %v976 = vpop.permute.xlu0 %975
        %vm977 = vcmp.eq.s32.totalorder %v967, %v973
        %vm978 = vcmp.eq.s32.totalorder %v968, %v973
        %vm979 = vcmp.eq.s32.totalorder %v969, %v973
        %vm980 = vcmp.eq.s32.totalorder %v970, %v973
        %vm981 = vcmp.eq.s32.totalorder %v967, %v976
        %vm982 = vcmp.eq.s32.totalorder %v968, %v976
        %vm983 = vcmp.eq.s32.totalorder %v969, %v976
        %vm984 = vcmp.eq.s32.totalorder %v970, %v976
        %v985 = vsel %vm977, %v952, %v824
        %v986 = vsel %vm978, %v953, %v825
        %v987 = vsel %vm979, %v954, %v826
        %v988 = vsel %vm980, %v955, %v827
        %v989 = vsel %vm981, %v956, %v828
        %v990 = vsel %vm982, %v957, %v829
        %v991 = vsel %vm983, %v958, %v830
        %v992 = vsel %vm984, %v959, %v831
        %v993 = vmul.f32 %v985, 64.0
        %v994 = vmul.f32 %v986, 64.0
        %v995 = vmul.f32 %v987, 64.0
        %v996 = vmul.f32 %v988, 64.0
        %v997 = vmul.f32 %v989, 64.0
        %v998 = vmul.f32 %v990, 64.0
        %v999 = vmul.f32 %v991, 64.0
        %v1000 = vmul.f32 %v992, 64.0
        %1001 = vst [vmem:[%s302] sm:$0xff] %v993
        %1002 = vst [vmem:[%s302 + $0x8] sm:$0xff] %v994
        %1003 = vst [vmem:[%s302 + $0x10] sm:$0xff] %v995
        %1004 = vst [vmem:[%s302 + $0x18] sm:$0xff] %v996
        %1005 = vst [vmem:[%s302 + $0x20] sm:$0xff] %v997
        %1006 = vst [vmem:[%s302 + $0x28] sm:$0xff] %v998
        %1007 = vst [vmem:[%s302 + $0x30] sm:$0xff] %v999
        %1008 = vst [vmem:[%s302 + $0x38] sm:$0xff] %v1000
        %s1009 = sand.u32 %s150, 1
        %s1010 = scalar_lea.sflag [#allocation4], %s1009
        %s1011 = sand.u32 %s150, 1
        %s1012 = smul.addr %s1011, 64
        %s1013 = scalar_lea.vmem [#allocation7], %s1012
        // Predicated region
        $region45: #{tpu_custom_call.1} parent=35 // pred_check
          %p1014 = pneg %p160
        $region46: #{tpu_custom_call.1} parent=35 // pred_check_branch
          %1016 = sbr.rel (%p1014) target = $region48
        $region47: #{tpu_custom_call.1} parent=35 // pred_region
          %s1017 = smul.u32 2, %s28
          %s1018 = smul.u32 4, %s29
          %s1020 = ssub.s32 1024, 1024
          %1021 = vsyncadd %s1010, %s1020
          %s1022 = smul.addr %s1017, 8
          %s1023 = sadd.s32 %s1018, %s1022
          %s1024 = smul.addr %s1023, 128
          %s1025 = scalar_lea.hbm %s4, %s1024
          %s1026 = sshll.u32 %s1013, 4
          %s1027 = int_to_ptr.vmem [resolvable:$true] %s1026
          %1032 = dma.vmem_to_hbm [thread:$0]  %s1027, 1024, %s1025, %s1010, 512, 1024, 32
        $region48: #{tpu_custom_call.1} parent=35 // pred_fallthru
          _
      $region36: #{tpu_custom_call.1} parent=5 // pred_fallthru
        _
      %p1033 = scmp.le.s32.totalorder 2, %s19
      // Predicated region
      $region49: #{tpu_custom_call.1} parent=5 // pred_check
        %p1034 = pneg %p1033
      $region50: #{tpu_custom_call.1} parent=5 // pred_check_branch
        %1036 = sbr.rel (%p1034) target = $region52
      $region51: #{tpu_custom_call.1} parent=5 // pred_region
        %s1037 = ssub.s32 %s19, 2
        // Predicated region
        $region53: #{tpu_custom_call.1} parent=51 // pred_check
          %p1038 = pneg %p166
        $region54: #{tpu_custom_call.1} parent=51 // pred_check_branch
          %1040 = sbr.rel (%p1038) target = $region56
        $region55: #{tpu_custom_call.1} parent=51 // pred_region
          %s1041 = sand.u32 %s151, 1
          %s1042 = scalar_lea.sflag [#allocation4], %s1041
          %s1043 = sand.u32 %s151, 1
          %s1044 = smul.addr %s1043, 64
          %s1045 = scalar_lea.vmem [#allocation7], %s1044
          %1046 = dma.done %s1042, 1024
        $region56: #{tpu_custom_call.1} parent=51 // pred_fallthru
          _
      $region52: #{tpu_custom_call.1} parent=5 // pred_fallthru
        _
    $region6: #{tpu_custom_call.1} parent=1 // loop_footer
      %s23 = sadd.s32 1, %s19
    $region7: #{tpu_custom_call.1} parent=1 // loop_footer_branch
      %18 = sbr.rel target = $region3
    $region8: #{tpu_custom_call.1} parent=1 // loop_exit
      _
    %1047 = vsyncpa [#allocation3], 1
    %s1048 = scalar_lea.sflag [#allocation3], 1
    %1049 = vsyncpa %s1048, 1
    %1050 = vsyncpa [#allocation6], 1
    %s1051 = scalar_lea.sflag [#allocation6], 1
    %1052 = vsyncpa %s1051, 1
    %1053 = vsyncpa [#allocation4], 1
    %s1054 = scalar_lea.sflag [#allocation4], 1
    %1055 = vsyncpa %s1054, 1

</llo_original>
